<compile_context>
chip_gen: v7x
topology: tpu7x:2x2x1
jax: 0.10.0
libtpu: 0.0.40
codegen_flags: <defaults>
</compile_context>

<pallas_src>
import jax
import jax.numpy as jnp
from jax.experimental import pallas as pl
from jax.experimental.pallas import tpu as pltpu


# --------------------------------------------------------------------------
# Stage 1: projection + nodes + identifier-shifted head/tail halves
# --------------------------------------------------------------------------
def _project_kernel(x_ref, w_ref, bias_ref, nodes_ref, head_ref, tail_ref):
    # x_ref:     (1, K, D)   span reps for this batch element
    # w_ref:     (D, H)      projection weight (in x out layout)
    # bias_ref:  (4, H)      fused biases:
    #              row 0: proj_bias + identifier[0, :H]   (nodes, first half)
    #              row 1: proj_bias + identifier[0, H:]   (nodes, second half)
    #              row 2: proj_bias + identifier[1, :H]   (edges head half)
    #              row 3: proj_bias + identifier[1, H:]   (edges tail half)
    # nodes_ref: (1, K, D)
    # head_ref:  (1, K, H)
    # tail_ref:  (1, K, H)
    H = w_ref.shape[1]
    raw = jnp.dot(x_ref[0], w_ref[...], preferred_element_type=jnp.float32)  # (K, H)
    biases = bias_ref[...]                                                   # (4, H)

    nodes_ref[0, :, :H] = (raw + biases[0:1, :]).astype(nodes_ref.dtype)
    nodes_ref[0, :, H:] = (raw + biases[1:2, :]).astype(nodes_ref.dtype)
    head_ref[0] = (raw + biases[2:3, :]).astype(head_ref.dtype)
    tail_ref[0] = (raw + biases[3:4, :]).astype(tail_ref.dtype)


# --------------------------------------------------------------------------
# Stage 2: tiled edges = pure broadcast + store (no adds, no concat)
# --------------------------------------------------------------------------
def _edges_kernel(head_ref, tail_ref, edges_ref):
    # head_ref:  (1, TI, H)   head half rows for this i-tile (identifier folded)
    # tail_ref:  (1, TJ, H)   tail half rows for this j-tile (identifier folded)
    # edges_ref: (1, TI, TJ, 2H)
    ti = head_ref.shape[1]
    h = head_ref.shape[2]
    tj = tail_ref.shape[1]

    heads = head_ref[0]                                        # (TI, H)
    tails = tail_ref[0]                                        # (TJ, H)

    # Write the two halves directly -- no (TI, TJ, D) concat intermediate.
    edges_ref[0, :, :, :h] = jnp.broadcast_to(heads[:, None, :], (ti, tj, h))
    edges_ref[0, :, :, h:] = jnp.broadcast_to(tails[None, :, :], (ti, tj, h))


def _pick_tile(k, target):
    """Largest tile <= target that divides k and satisfies the (8,128) rule."""
    if k <= target:
        return k
    for t in range(min(target, k), 0, -1):
        if k % t == 0 and (t % 8 == 0):
            return t
    return k  # fall back to the full extent (always legal)


def graph_embedder(candidate_span_rep, w, b, identifier, *, ti=8, tj=256):
    """candidate_span_rep: (B, K, D); w: (D, H); b: (H,); identifier: (2, D)."""
    B, K, D = candidate_span_rep.shape
    H = w.shape[1]
    assert H == D // 2 and 2 * H == D

    out_dtype = candidate_span_rep.dtype

    # Fold the projection bias and both graph identifiers into 4 per-half bias
    # rows so the K x K hot path carries zero VPU work.
    fused_bias = jnp.stack(
        [
            b + identifier[0, :H],
            b + identifier[0, H:],
            b + identifier[1, :H],
            b + identifier[1, H:],
        ],
        axis=0,
    ).astype(jnp.float32)                                       # (4, H)

    # ---- stage 1: per-batch projection (MXU) + nodes + head/tail halves ----
    nodes, head, tail = pl.pallas_call(
        _project_kernel,
        out_shape=(
            jax.ShapeDtypeStruct((B, K, D), out_dtype),
            jax.ShapeDtypeStruct((B, K, H), out_dtype),
            jax.ShapeDtypeStruct((B, K, H), out_dtype),
        ),
        grid_spec=pltpu.PrefetchScalarGridSpec(
            num_scalar_prefetch=0,
            grid=(B,),
            in_specs=[
                pl.BlockSpec((1, K, D), lambda bb: (bb, 0, 0)),
                pl.BlockSpec((D, H), lambda bb: (0, 0)),
                pl.BlockSpec((4, H), lambda bb: (0, 0)),
            ],
            out_specs=[
                pl.BlockSpec((1, K, D), lambda bb: (bb, 0, 0)),
                pl.BlockSpec((1, K, H), lambda bb: (bb, 0, 0)),
                pl.BlockSpec((1, K, H), lambda bb: (bb, 0, 0)),
            ],
        ),
        compiler_params=pltpu.CompilerParams(
            dimension_semantics=("parallel",)),
    )(candidate_span_rep, w, fused_bias)

    # ---- stage 2: tiled edges broadcast + store ----
    ti = _pick_tile(K, ti)
    tj = _pick_tile(K, tj)
    # VMEM per edges buffer = ti * tj * D * itemsize (double-buffered by Pallas);
    # defaults (ti=8, tj<=256) keep this well under the v7x 32 MiB scoped limit.
    edges = pl.pallas_call(
        _edges_kernel,
        out_shape=jax.ShapeDtypeStruct((B, K, K, D), out_dtype),
        grid_spec=pltpu.PrefetchScalarGridSpec(
            num_scalar_prefetch=0,
            grid=(B, K // ti, K // tj),
            in_specs=[
                pl.BlockSpec((1, ti, H), lambda bb, i, j: (bb, i, 0)),
                pl.BlockSpec((1, tj, H), lambda bb, i, j: (bb, j, 0)),
            ],
            out_specs=pl.BlockSpec(
                (1, ti, tj, D), lambda bb, i, j: (bb, i, j, 0)),
        ),
        compiler_params=pltpu.CompilerParams(
            dimension_semantics=("parallel", "parallel", "parallel")),
    )(head, tail)

    return nodes, edges


def _reference(x, w, b, identifier):
    proj = jnp.einsum("bkd,dh->bkh", x, w) + b
    B, K, _ = x.shape
    H = proj.shape[-1]
    nodes = jnp.concatenate([proj, proj], axis=-1) + identifier[0]
    heads = jnp.broadcast_to(proj[:, :, None, :], (B, K, K, H))
    tails = jnp.broadcast_to(proj[:, None, :, :], (B, K, K, H))
    edges = jnp.concatenate([heads, tails], axis=-1) + identifier[1]
    return nodes, edges


if __name__ == "__main__":
    B, K, d_model = 2, 8, 32
    H = d_model // 2

    key = jax.random.PRNGKey(0)
    kx, kw, kb, ki = jax.random.split(key, 4)

    x = jax.random.normal(kx, (B, K, d_model), dtype=jnp.float32)
    # nn.Linear(d_model, d_model//2): weight (H, D); kernel consumes (D, H).
    w = (jax.random.normal(kw, (H, d_model), dtype=jnp.float32) * 0.05).T
    b = jax.random.normal(kb, (H,), dtype=jnp.float32) * 0.05
    # identifier is a trainable (2, d_model) parameter (zeros at init); use
    # non-zero values here so the identifier-folding path is actually tested.
    identifier = jax.random.normal(ki, (2, d_model), dtype=jnp.float32) * 0.1

    nodes, edges = graph_embedder(x, w, b, identifier)
    jax.block_until_ready((nodes, edges))

    ref_nodes, ref_edges = _reference(x, w, b, identifier)
    assert nodes.shape == (B, K, d_model)
    assert edges.shape == (B, K, K, d_model)
    assert jnp.allclose(nodes, ref_nodes, atol=1e-5)
    assert jnp.allclose(edges, ref_edges, atol=1e-5)

    print("KERNEL_OK")
</pallas_src>

<mosaic_0001>
module attributes {stable_mosaic.version = 11 : i64} {
  func.func @_project_kernel(%arg0: i32, %arg1: memref<1x8x32xf32, #tpu.memory_space<vmem>>, %arg2: memref<32x16xf32, #tpu.memory_space<vmem>>, %arg3: memref<4x16xf32, #tpu.memory_space<vmem>>, %arg4: memref<1x8x32xf32, #tpu.memory_space<vmem>>, %arg5: memref<1x8x16xf32, #tpu.memory_space<vmem>>, %arg6: memref<1x8x16xf32, #tpu.memory_space<vmem>>) attributes {dimension_semantics = [#tpu.dimension_semantics<parallel>], iteration_bounds = array<i64: 2>, scalar_prefetch = 0 : i64, scratch_operands = 0 : i64, tpu.core_type = #tpu.core_type<tc>, window_params = [{transform_indices = @transform_0, window_bounds = array<i64: 1, 8, 32>}, {pipeline_mode = #tpu.pipeline_mode<synchronous>, transform_indices = @transform_1, window_bounds = array<i64: 32, 16>}, {pipeline_mode = #tpu.pipeline_mode<synchronous>, transform_indices = @transform_2, window_bounds = array<i64: 4, 16>}, {transform_indices = @transform_3, window_bounds = array<i64: 1, 8, 32>}, {transform_indices = @transform_4, window_bounds = array<i64: 1, 8, 16>}, {transform_indices = @transform_5, window_bounds = array<i64: 1, 8, 16>}]} {
    %c0 = arith.constant 0 : index
    %c0_0 = arith.constant 0 : index
    %c0_1 = arith.constant 0 : index
    %0 = vector.load %arg1[%c0, %c0_0, %c0_1] : memref<1x8x32xf32, #tpu.memory_space<vmem>>, vector<1x8x32xf32>
    %1 = vector.shape_cast %0 : vector<1x8x32xf32> to vector<8x32xf32>
    %c0_2 = arith.constant 0 : index
    %c0_3 = arith.constant 0 : index
    %2 = vector.load %arg2[%c0_2, %c0_3] : memref<32x16xf32, #tpu.memory_space<vmem>>, vector<32x16xf32>
    %cst = arith.constant dense<0.000000e+00> : vector<8x16xf32>
    %3 = tpu.matmul %1, %2, %cst {dimension_numbers = #tpu.dot_dimension_numbers<[1], [0], [0], [1], [0, 0, 1, 1], [], []>} : vector<8x32xf32>, vector<32x16xf32>, vector<8x16xf32> -> vector<8x16xf32>
    %c0_4 = arith.constant 0 : index
    %c0_5 = arith.constant 0 : index
    %4 = vector.load %arg3[%c0_4, %c0_5] : memref<4x16xf32, #tpu.memory_space<vmem>>, vector<4x16xf32>
    %5 = vector.extract_strided_slice %4 {offsets = [0, 0], sizes = [1, 16], strides = [1, 1]} : vector<4x16xf32> to vector<1x16xf32>
    %6 = vector.broadcast %5 : vector<1x16xf32> to vector<8x16xf32>
    %7 = arith.addf %3, %6 : vector<8x16xf32>
    %c0_6 = arith.constant 0 : index
    %c0_7 = arith.constant 0 : index
    %c0_8 = arith.constant 0 : index
    %8 = vector.load %arg4[%c0_6, %c0_7, %c0_8] : memref<1x8x32xf32, #tpu.memory_space<vmem>>, vector<1x8x16xf32>
    %9 = vector.shape_cast %8 : vector<1x8x16xf32> to vector<8x16xf32>
    %10 = vector.shape_cast %7 : vector<8x16xf32> to vector<1x8x16xf32>
    tpu.vector_store %arg4[%c0_6, %c0_7, %c0_8], %10 {strides = array<i32>} : memref<1x8x32xf32, #tpu.memory_space<vmem>>, vector<1x8x16xf32>,
    %11 = vector.extract_strided_slice %4 {offsets = [1, 0], sizes = [1, 16], strides = [1, 1]} : vector<4x16xf32> to vector<1x16xf32>
    %12 = vector.broadcast %11 : vector<1x16xf32> to vector<8x16xf32>
    %13 = arith.addf %3, %12 : vector<8x16xf32>
    %c0_9 = arith.constant 0 : index
    %c0_10 = arith.constant 0 : index
    %c16 = arith.constant 16 : index
    %14 = vector.load %arg4[%c0_9, %c0_10, %c16] : memref<1x8x32xf32, #tpu.memory_space<vmem>>, vector<1x8x16xf32>
    %15 = vector.shape_cast %14 : vector<1x8x16xf32> to vector<8x16xf32>
    %16 = vector.shape_cast %13 : vector<8x16xf32> to vector<1x8x16xf32>
    tpu.vector_store %arg4[%c0_9, %c0_10, %c16], %16 {strides = array<i32>} : memref<1x8x32xf32, #tpu.memory_space<vmem>>, vector<1x8x16xf32>,
    %17 = vector.extract_strided_slice %4 {offsets = [2, 0], sizes = [1, 16], strides = [1, 1]} : vector<4x16xf32> to vector<1x16xf32>
    %18 = vector.broadcast %17 : vector<1x16xf32> to vector<8x16xf32>
    %19 = arith.addf %3, %18 : vector<8x16xf32>
    %c0_11 = arith.constant 0 : index
    %c0_12 = arith.constant 0 : index
    %c0_13 = arith.constant 0 : index
    %20 = vector.load %arg5[%c0_11, %c0_12, %c0_13] : memref<1x8x16xf32, #tpu.memory_space<vmem>>, vector<1x8x16xf32>
    %21 = vector.shape_cast %20 : vector<1x8x16xf32> to vector<8x16xf32>
    %22 = vector.shape_cast %19 : vector<8x16xf32> to vector<1x8x16xf32>
    tpu.vector_store %arg5[%c0_11, %c0_12, %c0_13], %22 {strides = array<i32>} : memref<1x8x16xf32, #tpu.memory_space<vmem>>, vector<1x8x16xf32>,
    %23 = vector.extract_strided_slice %4 {offsets = [3, 0], sizes = [1, 16], strides = [1, 1]} : vector<4x16xf32> to vector<1x16xf32>
    %24 = vector.broadcast %23 : vector<1x16xf32> to vector<8x16xf32>
    %25 = arith.addf %3, %24 : vector<8x16xf32>
    %c0_14 = arith.constant 0 : index
    %c0_15 = arith.constant 0 : index
    %c0_16 = arith.constant 0 : index
    %26 = vector.load %arg6[%c0_14, %c0_15, %c0_16] : memref<1x8x16xf32, #tpu.memory_space<vmem>>, vector<1x8x16xf32>
    %27 = vector.shape_cast %26 : vector<1x8x16xf32> to vector<8x16xf32>
    %28 = vector.shape_cast %25 : vector<8x16xf32> to vector<1x8x16xf32>
    tpu.vector_store %arg6[%c0_14, %c0_15, %c0_16], %28 {strides = array<i32>} : memref<1x8x16xf32, #tpu.memory_space<vmem>>, vector<1x8x16xf32>,
    return
  }
  func.func @transform_0(%arg0: i32) -> (i32, i32, i32) {
    %c0_i32 = arith.constant 0 : i32
    %c0_i32_0 = arith.constant 0 : i32
    %c0_i32_1 = arith.constant 0 : i32
    return %arg0, %c0_i32, %c0_i32_0 : i32, i32, i32
  }
  func.func @transform_1(%arg0: i32) -> (i32, i32) {
    %c0_i32 = arith.constant 0 : i32
    %c0_i32_0 = arith.constant 0 : i32
    %c0_i32_1 = arith.constant 0 : i32
    return %c0_i32, %c0_i32_0 : i32, i32
  }
  func.func @transform_2(%arg0: i32) -> (i32, i32) {
    %c0_i32 = arith.constant 0 : i32
    %c0_i32_0 = arith.constant 0 : i32
    %c0_i32_1 = arith.constant 0 : i32
    return %c0_i32, %c0_i32_0 : i32, i32
  }
  func.func @transform_3(%arg0: i32) -> (i32, i32, i32) {
    %c0_i32 = arith.constant 0 : i32
    %c0_i32_0 = arith.constant 0 : i32
    %c0_i32_1 = arith.constant 0 : i32
    return %arg0, %c0_i32, %c0_i32_0 : i32, i32, i32
  }
  func.func @transform_4(%arg0: i32) -> (i32, i32, i32) {
    %c0_i32 = arith.constant 0 : i32
    %c0_i32_0 = arith.constant 0 : i32
    %c0_i32_1 = arith.constant 0 : i32
    return %arg0, %c0_i32, %c0_i32_0 : i32, i32, i32
  }
  func.func @transform_5(%arg0: i32) -> (i32, i32, i32) {
    %c0_i32 = arith.constant 0 : i32
    %c0_i32_0 = arith.constant 0 : i32
    %c0_i32_1 = arith.constant 0 : i32
    return %arg0, %c0_i32, %c0_i32_0 : i32, i32, i32
  }
}

</mosaic_0001>

<llo_original>
// kernel: tpu_custom_call.1
$region0: #{tpu_custom_call.1}
  #allocation0 [shape = 'u32[]', space=smem, size = 0x4, offset = 0x4, fixed_abs, tag = 'smem constant byte address 0x4 - core index']
  #allocation1 [shape = 'u32[144,128]{1,0:T(1,128)}', space=vmem, size = 0x12000, scoped, tag = 'internal scratch']
  %s0 = inlined_call_operand.vmem [shape: f32[2,8,32], index: 0, kind: input, shape index: {}]
  %s1 = inlined_call_operand.vmem [shape: f32[32,16], index: 1, kind: input, shape index: {}]
  %s2 = inlined_call_operand.vmem [shape: f32[4,16], index: 2, kind: input, shape index: {}]
  %s3 = inlined_call_operand.hbm [shape: f32[2,8,32], index: 3, kind: output, shape index: {0}]
  %s4 = inlined_call_operand.hbm [shape: f32[2,8,16], index: 4, kind: output, shape index: {1}]
  %s5 = inlined_call_operand.hbm [shape: f32[2,8,16], index: 5, kind: output, shape index: {2}]
  %6 = xla_tuple %s3, %s4, %s5
  %s7 = sld [smem:[#allocation0]]
  $region61: #{tpu_custom_call.1} parent=0
    _
  %s9 = ssub.s32 1, %s7
  %s10 = scalar_select 0, %s9, %s7
  $region1: #{tpu_custom_call.1} parent=0
    #allocation2 [shape = 'u8[8192]{0}', space=vmem, size = 0x2000, scoped, tag = 'output window, operand 0']
    #allocation3 [shape = 's32[2]{0}', space=sflag, size = 0x8, scoped, tag = 'scoped memory for tpu_custom_call.1']
    #allocation4 [shape = 'u8[8192]{0}', space=vmem, size = 0x2000, scoped, tag = 'output window, operand 1']
    #allocation5 [shape = 's32[2]{0}', space=sflag, size = 0x8, scoped, tag = 'scoped memory for tpu_custom_call.1']
    #allocation6 [shape = 'u8[8192]{0}', space=vmem, size = 0x2000, scoped, tag = 'output window, operand 2']
    %11 = vsyncpa [#allocation3], 0
    %s12 = scalar_lea.sflag [#allocation3], 1
    %13 = vsyncpa %s12, 0
    %14 = vsyncpa [#allocation5], 0
    %s15 = scalar_lea.sflag [#allocation5], 1
    %16 = vsyncpa %s15, 0
    loop: start=0, step=1, limit=4
    $region2: #{tpu_custom_call.1} parent=1 // loop_pre_header
      _
    $region3: #{tpu_custom_call.1} parent=1 // loop_header
      %s18 = sphi 0, %s22
      %p19 = scmp.ge.s32.totalorder %s18, 4
      %s28 = sphi 0, %s30
      %s31 = sphi 0, %s28
      %s32 = sphi 0, %s31
      %s48 = sphi 0, %s32
      %s52 = sphi 0, %s52
      %s54 = sphi 0, %s52
      %s55 = sphi 0, %s54
      %s69 = sphi 0, %s55
      %s73 = sphi 0, %s73
      %s75 = sphi 0, %s73
      %s76 = sphi 0, %s75
      %s90 = sphi 0, %s76
      %s96 = sphi 0, %s98
      %s99 = sphi 0, %s96
      %s100 = sphi 0, %s99
      %s116 = sphi 0, %s100
      %s122 = sphi 0, %s124
      %s125 = sphi 0, %s122
      %s126 = sphi 0, %s125
      %s142 = sphi 0, %s126
      %s148 = sphi 0, %s150
      %s151 = sphi 0, %s148
      %s152 = sphi 0, %s151
      %s168 = sphi 0, %s152
    $region4: #{tpu_custom_call.1} parent=1 // loop_header_branch
      %21 = sbr.rel (%p19) target = $region8
    $region5: #{tpu_custom_call.1} parent=1 // loop_body
      %s23 = ssub.s32 %s18, 1
      %s24 = ssub.s32 %s18, 2
      %s25 = sadd.s32 %s18, 1
      %s26 = ssub.s32 %s18, %s25
      %p27 = scmp.eq.s32.totalorder %s26, 0
      %s29 = sadd.s32 %s28, 1
      %s30 = scalar_select %p27, %s28, %s29
      %p33 = pneg %p27
      %p34 = scmp.eq.s32.totalorder %s18, 1
      %p35 = por %p33, %p34
      %p36 = scmp.ne.s32.totalorder %s28, %s31
      %p37 = scmp.eq.s32.totalorder %s18, 0
      %p38 = por %p36, %p37
      %p39 = scmp.ne.s32.totalorder %s28, %s31
      %p40 = scmp.eq.s32.totalorder %s23, 1
      %p41 = por %p39, %p40
      %p42 = scmp.ne.s32.totalorder %s31, %s32
      %p43 = scmp.eq.s32.totalorder %s23, 0
      %p44 = por %p42, %p43
      %p45 = scmp.ne.s32.totalorder %s31, %s32
      %p46 = scmp.eq.s32.totalorder %s24, 1
      %p47 = por %p45, %p46
      %p49 = scmp.ne.s32.totalorder %s32, %s48
      %p50 = scmp.eq.s32.totalorder %s24, 0
      %p51 = por %p49, %p50
      %s53 = sadd.s32 %s52, 1
      %p56 = scmp.eq.s32.totalorder %s18, 1
      %p57 = scmp.ne.s32.totalorder %s52, %s54
      %p58 = scmp.eq.s32.totalorder %s18, 0
      %p59 = por %p57, %p58
      %p60 = scmp.ne.s32.totalorder %s52, %s54
      %p61 = scmp.eq.s32.totalorder %s23, 1
      %p62 = por %p60, %p61
      %p63 = scmp.ne.s32.totalorder %s54, %s55
      %p64 = scmp.eq.s32.totalorder %s23, 0
      %p65 = por %p63, %p64
      %p66 = scmp.ne.s32.totalorder %s54, %s55
      %p67 = scmp.eq.s32.totalorder %s24, 1
      %p68 = por %p66, %p67
      %p70 = scmp.ne.s32.totalorder %s55, %s69
      %p71 = scmp.eq.s32.totalorder %s24, 0
      %p72 = por %p70, %p71
      %s74 = sadd.s32 %s73, 1
      %p77 = scmp.eq.s32.totalorder %s18, 1
      %p78 = scmp.ne.s32.totalorder %s73, %s75
      %p79 = scmp.eq.s32.totalorder %s18, 0
      %p80 = por %p78, %p79
      %p81 = scmp.ne.s32.totalorder %s73, %s75
      %p82 = scmp.eq.s32.totalorder %s23, 1
      %p83 = por %p81, %p82
      %p84 = scmp.ne.s32.totalorder %s75, %s76
      %p85 = scmp.eq.s32.totalorder %s23, 0
      %p86 = por %p84, %p85
      %p87 = scmp.ne.s32.totalorder %s75, %s76
      %p88 = scmp.eq.s32.totalorder %s24, 1
      %p89 = por %p87, %p88
      %p91 = scmp.ne.s32.totalorder %s76, %s90
      %p92 = scmp.eq.s32.totalorder %s24, 0
      %p93 = por %p91, %p92
      %s94 = ssub.s32 %s18, %s25
      %p95 = scmp.eq.s32.totalorder %s94, 0
      %s97 = sadd.s32 %s96, 1
      %s98 = scalar_select %p95, %s96, %s97
      %p101 = pneg %p95
      %p102 = scmp.eq.s32.totalorder %s18, 1
      %p103 = por %p101, %p102
      %p104 = scmp.ne.s32.totalorder %s96, %s99
      %p105 = scmp.eq.s32.totalorder %s18, 0
      %p106 = por %p104, %p105
      %p107 = scmp.ne.s32.totalorder %s96, %s99
      %p108 = scmp.eq.s32.totalorder %s23, 1
      %p109 = por %p107, %p108
      %p110 = scmp.ne.s32.totalorder %s99, %s100
      %p111 = scmp.eq.s32.totalorder %s23, 0
      %p112 = por %p110, %p111
      %p113 = scmp.ne.s32.totalorder %s99, %s100
      %p114 = scmp.eq.s32.totalorder %s24, 1
      %p115 = por %p113, %p114
      %p117 = scmp.ne.s32.totalorder %s100, %s116
      %p118 = scmp.eq.s32.totalorder %s24, 0
      %p119 = por %p117, %p118
      %s120 = ssub.s32 %s18, %s25
      %p121 = scmp.eq.s32.totalorder %s120, 0
      %s123 = sadd.s32 %s122, 1
      %s124 = scalar_select %p121, %s122, %s123
      %p127 = pneg %p121
      %p128 = scmp.eq.s32.totalorder %s18, 1
      %p129 = por %p127, %p128
      %p130 = scmp.ne.s32.totalorder %s122, %s125
      %p131 = scmp.eq.s32.totalorder %s18, 0
      %p132 = por %p130, %p131
      %p133 = scmp.ne.s32.totalorder %s122, %s125
      %p134 = scmp.eq.s32.totalorder %s23, 1
      %p135 = por %p133, %p134
      %p136 = scmp.ne.s32.totalorder %s125, %s126
      %p137 = scmp.eq.s32.totalorder %s23, 0
      %p138 = por %p136, %p137
      %p139 = scmp.ne.s32.totalorder %s125, %s126
      %p140 = scmp.eq.s32.totalorder %s24, 1
      %p141 = por %p139, %p140
      %p143 = scmp.ne.s32.totalorder %s126, %s142
      %p144 = scmp.eq.s32.totalorder %s24, 0
      %p145 = por %p143, %p144
      %s146 = ssub.s32 %s18, %s25
      %p147 = scmp.eq.s32.totalorder %s146, 0
      %s149 = sadd.s32 %s148, 1
      %s150 = scalar_select %p147, %s148, %s149
      %p153 = pneg %p147
      %p154 = scmp.eq.s32.totalorder %s18, 1
      %p155 = por %p153, %p154
      %p156 = scmp.ne.s32.totalorder %s148, %s151
      %p157 = scmp.eq.s32.totalorder %s18, 0
      %p158 = por %p156, %p157
      %p159 = scmp.ne.s32.totalorder %s148, %s151
      %p160 = scmp.eq.s32.totalorder %s23, 1
      %p161 = por %p159, %p160
      %p162 = scmp.ne.s32.totalorder %s151, %s152
      %p163 = scmp.eq.s32.totalorder %s23, 0
      %p164 = por %p162, %p163
      %p165 = scmp.ne.s32.totalorder %s151, %s152
      %p166 = scmp.eq.s32.totalorder %s24, 1
      %p167 = por %p165, %p166
      %p169 = scmp.ne.s32.totalorder %s152, %s168
      %p170 = scmp.eq.s32.totalorder %s24, 0
      %p171 = por %p169, %p170
      %p172 = scmp.le.s32.totalorder 1, %s18
      %p173 = scmp.lt.s32.totalorder %s18, 3
      %p174 = pnand %p172, %p173
      %p175 = pneg %p174
      // Predicated region
      $region9: #{tpu_custom_call.1} parent=5 // pred_check
        _
      $region10: #{tpu_custom_call.1} parent=5 // pred_check_branch
        %177 = sbr.rel (%p174) target = $region12
      $region11: #{tpu_custom_call.1} parent=5 // pred_region
        %s178 = ssub.s32 %s18, 1
        // Predicated region
        $region13: #{tpu_custom_call.1} parent=11 // pred_check
          %p179 = pneg %p65
        $region14: #{tpu_custom_call.1} parent=11 // pred_check_branch
          %181 = sbr.rel (%p179) target = $region16
        $region15: #{tpu_custom_call.1} parent=11 // pred_region
          _
        $region16: #{tpu_custom_call.1} parent=11 // pred_fallthru
          _
        // Predicated region
        $region17: #{tpu_custom_call.1} parent=11 // pred_check
          %p182 = pneg %p86
        $region18: #{tpu_custom_call.1} parent=11 // pred_check_branch
          %184 = sbr.rel (%p182) target = $region20
        $region19: #{tpu_custom_call.1} parent=11 // pred_region
          _
        $region20: #{tpu_custom_call.1} parent=11 // pred_fallthru
          _
      $region12: #{tpu_custom_call.1} parent=5 // pred_fallthru
        _
      %p185 = scmp.lt.s32.totalorder %s18, 2
      // Predicated region
      $region21: #{tpu_custom_call.1} parent=5 // pred_check
        %p186 = pneg %p185
      $region22: #{tpu_custom_call.1} parent=5 // pred_check_branch
        %188 = sbr.rel (%p186) target = $region24
      $region23: #{tpu_custom_call.1} parent=5 // pred_region
        // Predicated region
        $region25: #{tpu_custom_call.1} parent=23 // pred_check
          %p189 = pneg %p38
        $region26: #{tpu_custom_call.1} parent=23 // pred_check_branch
          %191 = sbr.rel (%p189) target = $region28
        $region27: #{tpu_custom_call.1} parent=23 // pred_region
          %p192 = scmp.lt.s32.totalorder %s18, 1
          %s193 = scalar_select %p192, %s18, 1
          %s194 = smul.addr %s193, 8
          %s195 = scalar_lea.vmem %s0, %s194
        $region28: #{tpu_custom_call.1} parent=23 // pred_fallthru
          _
      $region24: #{tpu_custom_call.1} parent=5 // pred_fallthru
        _
      %p196 = scmp.le.s32.totalorder 1, %s18
      %p197 = scmp.lt.s32.totalorder %s18, 3
      %p198 = pnand %p196, %p197
      %p199 = pneg %p198
      // Predicated region
      $region29: #{tpu_custom_call.1} parent=5 // pred_check
        _
      $region30: #{tpu_custom_call.1} parent=5 // pred_check_branch
        %201 = sbr.rel (%p198) target = $region32
      $region31: #{tpu_custom_call.1} parent=5 // pred_region
        %s202 = ssub.s32 %s18, 1
        %p203 = scmp.lt.s32.totalorder %s23, 1
        %s204 = scalar_select %p203, %s23, 1
        %s205 = smul.addr %s204, 8
        %s206 = scalar_lea.vmem %s0, %s205
        %p207 = pneg %p44
        %p208 = pneg %p41
        %p209 = pneg %p65
        %p210 = pneg %p62
        %p211 = pneg %p86
        %p212 = pneg %p83
        %p213 = pneg %p112
        %p214 = pneg %p109
        %s215 = sand.u32 %s99, 1
        %s216 = scalar_lea.sflag [#allocation3], %s215
        %s217 = sand.u32 %s99, 1
        %s218 = smul.addr %s217, 8
        %s219 = scalar_lea.vmem [#allocation2], %s218
        %p220 = pneg %p138
        %p221 = pneg %p135
        %s222 = sand.u32 %s23, 1
        %s223 = scalar_lea.sflag [#allocation5], %s222
        %s224 = sand.u32 %s125, 1
        %s225 = smul.addr %s224, 8
        %s226 = scalar_lea.vmem [#allocation4], %s225
        %p227 = pneg %p164
        %p228 = pneg %p161
        %s229 = sand.u32 %s23, 1
        %s230 = scalar_lea.sflag [#allocation5], %s229
        %s231 = sand.u32 %s151, 1
        %s232 = smul.addr %s231, 8
        %s233 = scalar_lea.vmem [#allocation6], %s232
        %p234 = scmp.lt.s32.totalorder %s23, 1
        %s235 = scalar_select %p234, %s23, 1
        %s236 = smul.addr %s235, 8
        %s237 = scalar_lea.vmem %s0, %s236
        %v238 = vld [vmem:[%s237] sm:$0xff]
        %v239 = vld [vmem:[%s1] sm:$0xff]
        %v240 = vld [vmem:[%s1 + $0x8] sm:$0xff]
        %v241 = vld [vmem:[%s1 + $0x10] sm:$0xff]
        %v242 = vld [vmem:[%s1 + $0x18] sm:$0xff]
        %vm243 = vcmask 261120
        %v245 = vsel %vm243, %v238, 0
        %247 = vmatprep.subr.mxu0 0.0
        %248 = vmatpush1.msra.mxu0 %v239
        %249 = vmatprep.subr.mxu0 0.0
        %250 = vmatpush1.msra.mxu0 %v240
        %251 = vmatprep.subr.mxu0 0.0
        %252 = vmatpush1.msra.mxu0 %v241
        %253 = vmatprep.subr.mxu0 0.0
        %254 = vmatpush1.msra.mxu0 %v242
        %255 = vmatprep.subr.mxu0 0.0
        %256 = vmatpush1.msra.mxu0 0.0
        %257 = vmatprep.subr.mxu0 0.0
        %258 = vmatpush1.msra.mxu0 0.0
        %259 = vmatprep.subr.mxu0 0.0
        %260 = vmatpush1.msra.mxu0 0.0
        %261 = vmatprep.subr.mxu0 0.0
        %262 = vmatpush1.msra.mxu0 0.0
        %263 = vmatprep.subr.mxu0 0.0
        %264 = vmatpush1.msra.mxu0 0.0
        %265 = vmatprep.subr.mxu0 0.0
        %266 = vmatpush1.msra.mxu0 0.0
        %267 = vmatprep.subr.mxu0 0.0
        %268 = vmatpush1.msra.mxu0 0.0
        %269 = vmatprep.subr.mxu0 0.0
        %270 = vmatpush1.msra.mxu0 0.0
        %271 = vmatprep.subr.mxu0 0.0
        %272 = vmatpush1.msra.mxu0 0.0
        %273 = vmatprep.subr.mxu0 0.0
        %274 = vmatpush1.msra.mxu0 0.0
        %275 = vmatprep.subr.mxu0 0.0
        %276 = vmatpush1.msra.mxu0 0.0
        %277 = vmatprep.subr.mxu0 0.0
        %278 = vmatpush1.msra.mxu0 0.0
        %279 = vmatprep.subr.mxu0 0.0
        %280 = vmatpush1.msra.mxu0 0.0
        %281 = vmatprep.subr.mxu0 0.0
        %282 = vmatpush1.msra.mxu0 0.0
        %283 = vmatprep.subr.mxu0 0.0
        %284 = vmatpush1.msra.mxu0 0.0
        %285 = vmatprep.subr.mxu0 0.0
        %286 = vmatpush1.msra.mxu0 0.0
        %287 = vmatprep.subr.mxu0 0.0
        %288 = vmatpush1.msra.mxu0 0.0
        %289 = vmatprep.subr.mxu0 0.0
        %290 = vmatpush1.msra.mxu0 0.0
        %291 = vmatprep.subr.mxu0 0.0
        %292 = vmatpush1.msra.mxu0 0.0
        %293 = vmatprep.subr.mxu0 0.0
        %294 = vmatpush1.msra.mxu0 0.0
        %295 = vmatprep.subr.mxu0 0.0
        %296 = vmatpush1.msra.mxu0 0.0
        %297 = vmatprep.subr.mxu0 0.0
        %298 = vmatpush1.msra.mxu0 0.0
        %299 = vmatprep.subr.mxu0 0.0
        %300 = vmatpush1.msra.mxu0 0.0
        %301 = vmatprep.subr.mxu0 0.0
        %302 = vmatpush1.msra.mxu0 0.0
        %303 = vmatprep.subr.mxu0 0.0
        %304 = vmatpush1.msra.mxu0 0.0
        %305 = vmatprep.subr.mxu0 0.0
        %306 = vmatpush1.msra.mxu0 0.0
        %307 = vmatprep.subr.mxu0 0.0
        %308 = vmatpush1.msra.mxu0 0.0
        %309 = vmatprep.subr.mxu0 0.0
        %310 = vmatpush1.msra.mxu0 0.0
        %311 = vmatprep.mubr.f32.mxu0 0.0
        %312 = vmatmul.mubr.f32.gmra.mrb[0].mxu0 %v245
        %v313 = vpop.f32.mrb[0].mxu0
        %v314 = vadd.f32 0.0, %v313
        %v315 = vpop.f32.mrb[0].mxu0
        %316 = vdwg.mxu0
        %v317 = vld [vmem:[%s2] sm:$0xf]
        %v318 = vlaneseq
        %v319 = vshrl.u32 %v318, 7
        %v320 = vsub.s32 0, %v319
        %v321 = vrot.slane %v317, %v320
        %v322 = vadd.f32 %v314, %v321
        %vm323 = vcmask 130048
        %324 = vst.msk [vmem:[%s219] sm:$0xff] %vm323, %v322
        %v325 = vlaneseq
        %v326 = vshrl.u32 %v325, 7
        %v327 = vsub.s32 1, %v326
        %v328 = vrot.slane %v317, %v327
        %v329 = vadd.f32 %v314, %v328
        %331 = vrot.lane.b32.xlu0 %v329, 16
        %v332 = vpop.permute.xlu0 %331
        %vm334 = vcmask 261248
        %335 = vst.msk [vmem:[%s219] sm:$0xff] %vm334, %v332
        %v336 = vlaneseq
        %v337 = vshrl.u32 %v336, 7
        %v338 = vsub.s32 2, %v337
        %v339 = vrot.slane %v317, %v338
        %v340 = vadd.f32 %v314, %v339
        %341 = vst.msk [vmem:[%s226] sm:$0xff] %vm323, %v340
        %v342 = vlaneseq
        %v343 = vshrl.u32 %v342, 7
        %v344 = vsub.s32 3, %v343
        %v345 = vrot.slane %v317, %v344
        %v346 = vadd.f32 %v314, %v345
        %347 = vst.msk [vmem:[%s233] sm:$0xff] %vm323, %v346
        %s348 = sand.u32 %s99, 1
        %s349 = scalar_lea.sflag [#allocation3], %s348
        %s350 = sand.u32 %s99, 1
        %s351 = smul.addr %s350, 8
        %s352 = scalar_lea.vmem [#allocation2], %s351
        %s353 = sand.u32 %s23, 1
        %s354 = scalar_lea.sflag [#allocation5], %s353
        %s355 = sand.u32 %s125, 1
        %s356 = smul.addr %s355, 8
        %s357 = scalar_lea.vmem [#allocation4], %s356
        %s358 = sand.u32 %s23, 1
        %s359 = scalar_lea.sflag [#allocation5], %s358
        %s360 = sand.u32 %s151, 1
        %s361 = smul.addr %s360, 8
        %s362 = scalar_lea.vmem [#allocation6], %s361
        // Predicated region
        $region33: #{tpu_custom_call.1} parent=31 // pred_check
          %p363 = pneg %p109
        $region34: #{tpu_custom_call.1} parent=31 // pred_check_branch
          %365 = sbr.rel (%p363) target = $region36
        $region35: #{tpu_custom_call.1} parent=31 // pred_region
          %s367 = ssub.s32 128, 128
          %368 = vsyncadd %s349, %s367
          %s369 = smul.addr %s23, 128
          %s370 = scalar_lea.hbm %s3, %s369
          %s372 = sshll.u32 %s352, 4
          %s373 = int_to_ptr.vmem [resolvable:$true] %s372
          %375 = dma.vmem_to_hbm [thread:$0]  %s373, 128, %s370, %s349
        $region36: #{tpu_custom_call.1} parent=31 // pred_fallthru
          _
        // Predicated region
        $region37: #{tpu_custom_call.1} parent=31 // pred_check
          %p376 = pneg %p135
        $region38: #{tpu_custom_call.1} parent=31 // pred_check_branch
          %378 = sbr.rel (%p376) target = $region40
        $region39: #{tpu_custom_call.1} parent=31 // pred_region
          %s380 = ssub.s32 128, 128
          %381 = vsyncadd %s354, %s380
          %s382 = smul.addr %s23, 128
          %s383 = scalar_lea.hbm %s4, %s382
          %s385 = sshll.u32 %s357, 4
          %s386 = int_to_ptr.vmem [resolvable:$true] %s385
          %388 = dma.vmem_to_hbm [thread:$0]  %s386, 128, %s383, %s354
        $region40: #{tpu_custom_call.1} parent=31 // pred_fallthru
          _
        // Predicated region
        $region41: #{tpu_custom_call.1} parent=31 // pred_check
          %p389 = pneg %p161
        $region42: #{tpu_custom_call.1} parent=31 // pred_check_branch
          %391 = sbr.rel (%p389) target = $region44
        $region43: #{tpu_custom_call.1} parent=31 // pred_region
          %s393 = ssub.s32 128, 128
          %394 = vsyncadd %s359, %s393
          %s395 = smul.addr %s23, 128
          %s396 = scalar_lea.hbm %s5, %s395
          %s398 = sshll.u32 %s362, 4
          %s399 = int_to_ptr.vmem [resolvable:$true] %s398
          %401 = dma.vmem_to_hbm [thread:$0]  %s399, 128, %s396, %s359
        $region44: #{tpu_custom_call.1} parent=31 // pred_fallthru
          _
      $region32: #{tpu_custom_call.1} parent=5 // pred_fallthru
        _
      %p402 = scmp.le.s32.totalorder 2, %s18
      // Predicated region
      $region45: #{tpu_custom_call.1} parent=5 // pred_check
        %p403 = pneg %p402
      $region46: #{tpu_custom_call.1} parent=5 // pred_check_branch
        %405 = sbr.rel (%p403) target = $region48
      $region47: #{tpu_custom_call.1} parent=5 // pred_region
        %s406 = ssub.s32 %s18, 2
        // Predicated region
        $region49: #{tpu_custom_call.1} parent=47 // pred_check
          %p407 = pneg %p115
        $region50: #{tpu_custom_call.1} parent=47 // pred_check_branch
          %409 = sbr.rel (%p407) target = $region52
        $region51: #{tpu_custom_call.1} parent=47 // pred_region
          %s410 = sand.u32 %s100, 1
          %s411 = scalar_lea.sflag [#allocation3], %s410
          %s412 = sand.u32 %s100, 1
          %s413 = smul.addr %s412, 8
          %s414 = scalar_lea.vmem [#allocation2], %s413
          %415 = dma.done %s411, 128
        $region52: #{tpu_custom_call.1} parent=47 // pred_fallthru
          _
        // Predicated region
        $region53: #{tpu_custom_call.1} parent=47 // pred_check
          %p416 = pneg %p141
        $region54: #{tpu_custom_call.1} parent=47 // pred_check_branch
          %418 = sbr.rel (%p416) target = $region56
        $region55: #{tpu_custom_call.1} parent=47 // pred_region
          %s419 = sand.u32 %s24, 1
          %s420 = scalar_lea.sflag [#allocation5], %s419
          %s421 = sand.u32 %s126, 1
          %s422 = smul.addr %s421, 8
          %s423 = scalar_lea.vmem [#allocation4], %s422
          %424 = dma.done %s420, 128
        $region56: #{tpu_custom_call.1} parent=47 // pred_fallthru
          _
        // Predicated region
        $region57: #{tpu_custom_call.1} parent=47 // pred_check
          %p425 = pneg %p167
        $region58: #{tpu_custom_call.1} parent=47 // pred_check_branch
          %427 = sbr.rel (%p425) target = $region60
        $region59: #{tpu_custom_call.1} parent=47 // pred_region
          %s428 = sand.u32 %s24, 1
          %s429 = scalar_lea.sflag [#allocation5], %s428
          %s430 = sand.u32 %s152, 1
          %s431 = smul.addr %s430, 8
          %s432 = scalar_lea.vmem [#allocation6], %s431
          %433 = dma.done %s429, 128
        $region60: #{tpu_custom_call.1} parent=47 // pred_fallthru
          _
      $region48: #{tpu_custom_call.1} parent=5 // pred_fallthru
        _
    $region6: #{tpu_custom_call.1} parent=1 // loop_footer
      %s22 = sadd.s32 1, %s18
    $region7: #{tpu_custom_call.1} parent=1 // loop_footer_branch
      %17 = sbr.rel target = $region3
    $region8: #{tpu_custom_call.1} parent=1 // loop_exit
      _
    %434 = vsyncpa [#allocation3], 1
    %s435 = scalar_lea.sflag [#allocation3], 1
    %436 = vsyncpa %s435, 1
    %437 = vsyncpa [#allocation5], 1
    %s438 = scalar_lea.sflag [#allocation5], 1
    %439 = vsyncpa %s438, 1

</llo_original>
